<compile_context>
chip_gen: v5e
topology: v5e:2x2
jax: 0.10.0
libtpu: 0.0.40
codegen_flags: <defaults>
</compile_context>

<pallas_src>
import functools

import jax
import jax.numpy as jnp
from jax.experimental import pallas as pl
from jax.experimental.pallas import tpu as pltpu


def _hardsigmoid(x):
    return jnp.clip(0.2 * x + 0.5, 0.0, 1.0)


def _softsign(x):
    # EUP approximate reciprocal; denominator >= 1 so it is well conditioned.
    return x * pl.reciprocal(1.0 + jnp.abs(x), approx=True)


# --------------------------------------------------------------------------
# Kernels
# --------------------------------------------------------------------------
def _ibilstm_dir_kernel(x_ref, wx_ref, wh_ref, b_ref, out_ref,
                        xz_ref, h_scr, c_scr, *, Bp, Tc, Hp, T_real):
    """grid = (direction, time-chunk).  One invocation = one chunk of one dir.

    x_ref:   (Tc*Bp, D)    bf16 chunk of time-major flattened input
    wx_ref:  (D, 4*Hp)     bf16 fused, gate-padded input weights (this dir)
    wh_ref:  (Hp, 4*Hp)    bf16 fused, gate-padded recurrent weights (this dir)
    b_ref:   (1, 4*Hp)     f32 fused bias (b_x + b_h)
    out_ref: (Tc*Bp, Hp)   bf16 hidden states of this chunk
    xz_ref:  (Tc*Bp, 4*Hp) f32 scratch: chunk input projection
    h_scr/c_scr: (Bp, Hp)  f32 recurrent state, persists across chunks
    """
    d = pl.program_id(0)            # 0 = forward, 1 = backward
    c = pl.program_id(1)            # chunk index along the grid
    nc = pl.num_programs(1)

    # Reset recurrent state at the start of each direction.
    @pl.when(c == 0)
    def _():
        h_scr[...] = jnp.zeros_like(h_scr)
        c_scr[...] = jnp.zeros_like(c_scr)

    # Chunk-parallel input projection on the MXU (bf16 in, f32 accumulate).
    xz_ref[...] = (
        jnp.dot(x_ref[...], wx_ref[...], preferred_element_type=jnp.float32)
        + b_ref[...]
    )

    # Direction-dependent walk, hoisted out of the step loop (scalar unit).
    stride = 1 - 2 * d                      # +1 fwd, -1 bwd
    lt0 = d * (Tc - 1)                      # first local time index
    blk = d * (nc - 1) + stride * c         # which global time-chunk this is
    t_base = blk * Tc                       # global time of local index 0

    def step(s, carry):
        h, c_state = carry                                  # (Bp, Hp) f32
        lt = lt0 + stride * s                               # local time index
        valid = (t_base + lt) < T_real                      # mask padded steps
        row = pl.multiple_of(lt * Bp, Bp)

        z = xz_ref[pl.ds(row, Bp), :] + jnp.dot(
            h.astype(jnp.bfloat16), wh_ref[...],
            preferred_element_type=jnp.float32)

        i_t = _hardsigmoid(z[:, 0 * Hp:1 * Hp])
        f_t = _hardsigmoid(z[:, 1 * Hp:2 * Hp])
        o_t = _hardsigmoid(z[:, 2 * Hp:3 * Hp])
        c_tilde = _softsign(z[:, 3 * Hp:4 * Hp])

        c_new = f_t * c_state + i_t * c_tilde
        h_new = o_t * _softsign(c_new)

        # Freeze state on padded (t >= T) steps so the backward direction's
        # leading pad rows do not pollute the recurrence.
        c_state = jnp.where(valid, c_new, c_state)
        h = jnp.where(valid, h_new, h)

        out_ref[pl.ds(row, Bp), :] = h.astype(out_ref.dtype)
        return h, c_state

    h, c_state = jax.lax.fori_loop(0, Tc, step, (h_scr[...], c_scr[...]))
    h_scr[...] = h
    c_scr[...] = c_state


def _combine_kernel(h_ref, o_ref):
    """out = hardsigmoid(h_forward + h_backward), one time-chunk per call."""
    s = h_ref[0].astype(jnp.float32) + h_ref[1].astype(jnp.float32)
    o_ref[...] = _hardsigmoid(s).astype(o_ref.dtype)


# --------------------------------------------------------------------------
# Sizing helpers
# --------------------------------------------------------------------------
def _pick_time_chunk(T, Bp, D, Hp, budget_bytes=24 << 20):
    """Largest time-chunk whose per-chunk VMEM footprint fits the budget
    (conservative enough for v7x's 64 MiB per-core VMEM)."""
    Gp = 4 * Hp
    per_t = Bp * (2 * D * 2        # x chunk, bf16, double buffered
                  + Gp * 4         # xz scratch, f32, single buffer
                  + 2 * Hp * 2)    # out chunk, bf16, double buffered
    return int(max(1, min(T, budget_bytes // per_t)))


def _vmem_limit(*nbytes, headroom=1.5, floor=32 << 20, cap=120 << 20):
    need = int(sum(nbytes) * headroom) + (2 << 20)
    return int(min(max(need, floor), cap))


# --------------------------------------------------------------------------
# Wrapper
# --------------------------------------------------------------------------
def ibilstm(x, params, *, time_chunk=None):
    """IBiLSTM forward.

    x:      (B, T, D) float32
    params: dict from pack_params(): stacked, gate-padded fused weights.
    returns (B, T, H)
    """
    B, T, D = x.shape
    H = params["hidden_size"]
    Hp = params["w_h"].shape[1]
    Gp = 4 * Hp

    Bp = -(-B // 8) * 8                       # sublane-align the batch
    if time_chunk is None:
        time_chunk = _pick_time_chunk(T, Bp, D, Hp)
    Tc = max(1, min(int(time_chunk), T))
    NC = -(-T // Tc)
    Tp = NC * Tc                              # padded sequence length
    Rc = Tc * Bp                              # rows per time-chunk (time-major)

    # Pad batch + time with zeros, go time-major, flatten, cast to bf16.
    xp = jnp.zeros((Bp, Tp, D), x.dtype).at[:B, :T, :].set(x)
    x2d = jnp.transpose(xp, (1, 0, 2)).reshape(Tp * Bp, D).astype(jnp.bfloat16)

    kernel = functools.partial(_ibilstm_dir_kernel, Bp=Bp, Tc=Tc, Hp=Hp, T_real=T)

    lstm_vmem = _vmem_limit(
        2 * Rc * D * 2,        # x chunk (bf16, double buffered)
        2 * D * Gp * 2,        # W_x (bf16, double buffered)
        2 * Hp * Gp * 2,       # W_h (bf16, double buffered)
        2 * Gp * 4,            # bias
        2 * Rc * Hp * 2,       # out chunk (bf16, double buffered)
        Rc * Gp * 4,           # xz scratch (f32)
        2 * Bp * Hp * 4,       # h/c state
    )

    h_both = pl.pallas_call(
        kernel,
        out_shape=jax.ShapeDtypeStruct((2, Tp * Bp, Hp), jnp.bfloat16),
        grid_spec=pltpu.PrefetchScalarGridSpec(
            num_scalar_prefetch=0,
            grid=(2, NC),                                     # (direction, chunk)
            in_specs=[
                # forward walks chunks 0..NC-1, backward walks NC-1..0
                pl.BlockSpec((Rc, D),
                             lambda d, c: (d * (NC - 1) + (1 - 2 * d) * c, 0)),
                pl.BlockSpec((None, D, Gp), lambda d, c: (d, 0, 0)),   # W_x
                pl.BlockSpec((None, Hp, Gp), lambda d, c: (d, 0, 0)),  # W_h
                pl.BlockSpec((None, 1, Gp), lambda d, c: (d, 0, 0)),   # bias
            ],
            out_specs=pl.BlockSpec(
                (None, Rc, Hp),
                lambda d, c: (d, d * (NC - 1) + (1 - 2 * d) * c, 0)),
            scratch_shapes=[
                pltpu.VMEM((Rc, Gp), jnp.float32),   # xz: X_chunk @ W_x + b
                pltpu.VMEM((Bp, Hp), jnp.float32),   # h state (across chunks)
                pltpu.VMEM((Bp, Hp), jnp.float32),   # c state (across chunks)
            ],
        ),
        compiler_params=pltpu.CompilerParams(
            # direction axis is independent ("parallel"; on v7x this is the
            # candidate for a per-TensorCore split), chunk axis carries state.
            dimension_semantics=("parallel", "arbitrary"),
            vmem_limit_bytes=lstm_vmem,
        ),
    )(x2d, params["w_x"], params["w_h"], params["b"])

    comb_vmem = _vmem_limit(2 * 2 * Rc * Hp * 2, 2 * Rc * Hp * 4)
    out2d = pl.pallas_call(
        _combine_kernel,
        out_shape=jax.ShapeDtypeStruct((Tp * Bp, Hp), x.dtype),
        grid_spec=pltpu.PrefetchScalarGridSpec(
            num_scalar_prefetch=0,
            grid=(NC,),
            in_specs=[pl.BlockSpec((2, Rc, Hp), lambda c: (0, c, 0))],
            out_specs=pl.BlockSpec((Rc, Hp), lambda c: (c, 0)),
        ),
        compiler_params=pltpu.CompilerParams(
            dimension_semantics=("parallel",),
            vmem_limit_bytes=comb_vmem,
        ),
    )(h_both)

    out = out2d.reshape(Tp, Bp, Hp)[:T, :B, :H]   # drop time/batch/lane padding
    return jnp.transpose(out, (1, 0, 2))          # (B, T, H)


# --------------------------------------------------------------------------
# Parameters
# --------------------------------------------------------------------------
def init_cell_params(key, input_size, hidden_size, dtype=jnp.float32):
    """One ILSTMCell's 8 Linear layers, fused into
       w_x (D, 4H), w_h (H, 4H), b (1, 4H), gate order [i | f | o | c~]."""
    ks = jax.random.split(key, 16)
    H, D = hidden_size, input_size
    scale_x = 1.0 / jnp.sqrt(D)
    scale_h = 1.0 / jnp.sqrt(H)

    def lin(kw, kb, fan_in, scale):
        w = jax.random.uniform(kw, (fan_in, H), dtype, -scale, scale)
        bb = jax.random.uniform(kb, (H,), dtype, -scale, scale)
        return w, bb

    wx_list, bx_list, wh_list, bh_list = [], [], [], []
    for g in range(4):
        wx, bx = lin(ks[4 * g + 0], ks[4 * g + 1], D, scale_x)
        wh, bh = lin(ks[4 * g + 2], ks[4 * g + 3], H, scale_h)
        wx_list.append(wx); bx_list.append(bx)
        wh_list.append(wh); bh_list.append(bh)

    w_x = jnp.concatenate(wx_list, axis=1)                              # (D, 4H)
    w_h = jnp.concatenate(wh_list, axis=1)                              # (H, 4H)
    b = (jnp.concatenate(bx_list) + jnp.concatenate(bh_list))[None, :]  # (1, 4H)
    return w_x, w_h, b


def _pad_gate_cols(w, H, Hp):
    """(rows, 4H) -> (rows, 4Hp): pad each gate's column block to Hp lanes."""
    rows = w.shape[0]
    w4 = w.reshape(rows, 4, H)
    out = jnp.zeros((rows, 4, Hp), w.dtype).at[:, :, :H].set(w4)
    return out.reshape(rows, 4 * Hp)


def pack_params(fused_fwd, fused_bwd, hidden_size):
    """Stack the two directions, pad gates to 128-lane blocks, cast matmul
    operands to bf16 (bias stays f32 for the f32 accumulation path)."""
    H = hidden_size
    Hp = -(-H // 128) * 128

    def pad_dir(w_x, w_h, b):
        w_x_p = _pad_gate_cols(w_x, H, Hp)                       # (D, 4Hp)
        w_h_p = _pad_gate_cols(w_h, H, Hp)                       # (H, 4Hp)
        w_h_p = jnp.zeros((Hp, 4 * Hp), w_h_p.dtype).at[:H].set(w_h_p)
        b_p = _pad_gate_cols(b, H, Hp)                           # (1, 4Hp)
        return w_x_p, w_h_p, b_p

    wxf, whf, bf = pad_dir(*fused_fwd)
    wxb, whb, bb = pad_dir(*fused_bwd)
    # Invariant (must be preserved by any re-packing/quantization): padded
    # W_x/b columns and padded W_h rows+columns are zero, so the padded state
    # lanes inside the kernel stay exactly zero.
    return {
        "w_x": jnp.stack([wxf, wxb]).astype(jnp.bfloat16),   # (2, D, 4Hp)
        "w_h": jnp.stack([whf, whb]).astype(jnp.bfloat16),   # (2, Hp, 4Hp)
        "b": jnp.stack([bf, bb]).astype(jnp.float32),        # (2, 1, 4Hp)
        "hidden_size": H,
    }


# --------------------------------------------------------------------------
# Pure-JAX reference (mirrors the PyTorch IBiLSTM forward, full f32)
# --------------------------------------------------------------------------
def reference_ibilstm(x, fused_fwd, fused_bwd):
    B, T, _ = x.shape
    H = fused_fwd[0].shape[1] // 4
    hs = lambda v: jnp.clip(0.2 * v + 0.5, 0.0, 1.0)
    ss = lambda v: v / (1.0 + jnp.abs(v))

    def cell(xt, h, c, w_x, w_h, b):
        z = xt @ w_x + h @ w_h + b
        i_t = hs(z[:, 0 * H:1 * H])
        f_t = hs(z[:, 1 * H:2 * H])
        o_t = hs(z[:, 2 * H:3 * H])
        c_tilde = ss(z[:, 3 * H:4 * H])
        c = f_t * c + i_t * c_tilde
        h = o_t * ss(c)
        return h, c

    hf = jnp.zeros((B, H), jnp.float32); cf = jnp.zeros((B, H), jnp.float32)
    hb = jnp.zeros((B, H), jnp.float32); cb = jnp.zeros((B, H), jnp.float32)
    fwd = [None] * T
    bwd = [None] * T
    for t in range(T):
        hf, cf = cell(x[:, t], hf, cf, *fused_fwd)
        fwd[t] = hf
    for t in reversed(range(T)):
        hb, cb = cell(x[:, t], hb, cb, *fused_bwd)
        bwd[t] = hb
    return jnp.stack([hs(fwd[t] + bwd[t]) for t in range(T)], axis=1)


# --------------------------------------------------------------------------
if __name__ == "__main__":
    key = jax.random.PRNGKey(0)
    k_x, k_f, k_b = jax.random.split(key, 3)

    batch = 4          # exercises batch padding 4 -> 8 sublanes
    seq_len = 10
    input_size = 16
    hidden_size = 32   # gate blocks padded 32 -> 128 lanes

    x = jax.random.normal(k_x, (batch, seq_len, input_size), jnp.float32)
    fused_fwd = init_cell_params(k_f, input_size, hidden_size)
    fused_bwd = init_cell_params(k_b, input_size, hidden_size)
    params = pack_params(fused_fwd, fused_bwd, hidden_size)

    # time_chunk=4 with T=10 -> 3 chunks + tail padding: exercises the
    # cross-chunk state carry, the backward chunk reversal, and the pad mask.
    out = ibilstm(x, params, time_chunk=4)
    jax.block_until_ready(out)

    out_ref = reference_ibilstm(x, fused_fwd, fused_bwd)
    assert out.shape == (batch, seq_len, hidden_size)
    # bf16 matmul operands + bf16 intermediate + approx reciprocal vs f32 ref.
    err = float(jnp.max(jnp.abs(out - out_ref)))
    assert err < 2e-2, err

    print("KERNEL_OK")
</pallas_src>

<mosaic_0001>
module attributes {stable_mosaic.version = 11 : i64} {
  func.func @_ibilstm_dir_kernel(%arg0: i32, %arg1: i32, %arg2: memref<32x16xbf16, #tpu.memory_space<vmem>>, %arg3: memref<1x16x512xbf16, #tpu.memory_space<vmem>>, %arg4: memref<1x128x512xbf16, #tpu.memory_space<vmem>>, %arg5: memref<1x1x512xf32, #tpu.memory_space<vmem>>, %arg6: memref<1x32x128xbf16, #tpu.memory_space<vmem>>, %arg7: memref<32x512xf32, #tpu.memory_space<vmem>>, %arg8: memref<8x128xf32, #tpu.memory_space<vmem>>, %arg9: memref<8x128xf32, #tpu.memory_space<vmem>>) attributes {dimension_semantics = [#tpu.dimension_semantics<parallel>, #tpu.dimension_semantics<arbitrary>], iteration_bounds = array<i64: 2, 3>, scalar_prefetch = 0 : i64, scratch_operands = 3 : i64, tpu.core_type = #tpu.core_type<tc>, window_params = [{transform_indices = @transform_0, window_bounds = array<i64: 32, 16>}, {transform_indices = @transform_1, window_bounds = array<i64: 1, 16, 512>}, {transform_indices = @transform_2, window_bounds = array<i64: 1, 128, 512>}, {transform_indices = @transform_3, window_bounds = array<i64: 1, 1, 512>}, {transform_indices = @transform_4, window_bounds = array<i64: 1, 32, 128>}]} {
    %c0_i32 = arith.constant 0 : i32
    %0 = arith.cmpi eq, %arg1, %c0_i32 : i32
    %1 = arith.extui %0 : i1 to i32
    %c0_i32_0 = arith.constant 0 : i32
    %2 = arith.cmpi ne, %1, %c0_i32_0 : i32
    scf.if %2 {
      %cst_23 = arith.constant 0.000000e+00 : f32
      %25 = vector.broadcast %cst_23 : f32 to vector<8x128xf32>
      %c0_24 = arith.constant 0 : index
      %c0_25 = arith.constant 0 : index
      %26 = vector.load %arg8[%c0_24, %c0_25] : memref<8x128xf32, #tpu.memory_space<vmem>>, vector<8x128xf32>
      tpu.vector_store %arg8[%c0_24, %c0_25], %25 {strides = array<i32>} : memref<8x128xf32, #tpu.memory_space<vmem>>, vector<8x128xf32>,
      %cst_26 = arith.constant 0.000000e+00 : f32
      %27 = vector.broadcast %cst_26 : f32 to vector<8x128xf32>
      %c0_27 = arith.constant 0 : index
      %c0_28 = arith.constant 0 : index
      %28 = vector.load %arg9[%c0_27, %c0_28] : memref<8x128xf32, #tpu.memory_space<vmem>>, vector<8x128xf32>
      tpu.vector_store %arg9[%c0_27, %c0_28], %27 {strides = array<i32>} : memref<8x128xf32, #tpu.memory_space<vmem>>, vector<8x128xf32>,
    } else {
    }
    %c0 = arith.constant 0 : index
    %c0_1 = arith.constant 0 : index
    %3 = vector.load %arg2[%c0, %c0_1] : memref<32x16xbf16, #tpu.memory_space<vmem>>, vector<32x16xbf16>
    %c0_2 = arith.constant 0 : index
    %c0_3 = arith.constant 0 : index
    %c0_4 = arith.constant 0 : index
    %4 = vector.load %arg3[%c0_2, %c0_3, %c0_4] : memref<1x16x512xbf16, #tpu.memory_space<vmem>>, vector<1x16x512xbf16>
    %5 = vector.shape_cast %4 : vector<1x16x512xbf16> to vector<16x512xbf16>
    %cst = arith.constant dense<0.000000e+00> : vector<32x512xf32>
    %6 = tpu.matmul %3, %5, %cst {dimension_numbers = #tpu.dot_dimension_numbers<[1], [0], [0], [1], [0, 0, 1, 1], [], []>} : vector<32x16xbf16>, vector<16x512xbf16>, vector<32x512xf32> -> vector<32x512xf32>
    %c0_5 = arith.constant 0 : index
    %c0_6 = arith.constant 0 : index
    %c0_7 = arith.constant 0 : index
    %7 = vector.load %arg5[%c0_5, %c0_6, %c0_7] : memref<1x1x512xf32, #tpu.memory_space<vmem>>, vector<1x1x512xf32>
    %8 = vector.shape_cast %7 : vector<1x1x512xf32> to vector<1x512xf32>
    %9 = vector.broadcast %8 : vector<1x512xf32> to vector<32x512xf32>
    %10 = arith.addf %6, %9 : vector<32x512xf32>
    %c0_8 = arith.constant 0 : index
    %c0_9 = arith.constant 0 : index
    %11 = vector.load %arg7[%c0_8, %c0_9] : memref<32x512xf32, #tpu.memory_space<vmem>>, vector<32x512xf32>
    tpu.vector_store %arg7[%c0_8, %c0_9], %10 {strides = array<i32>} : memref<32x512xf32, #tpu.memory_space<vmem>>, vector<32x512xf32>,
    %c2_i32 = arith.constant 2 : i32
    %12 = arith.muli %c2_i32, %arg0 : i32
    %c1_i32 = arith.constant 1 : i32
    %13 = arith.subi %c1_i32, %12 : i32
    %c3_i32 = arith.constant 3 : i32
    %14 = arith.muli %arg0, %c3_i32 : i32
    %c2_i32_10 = arith.constant 2 : i32
    %15 = arith.muli %arg0, %c2_i32_10 : i32
    %16 = arith.muli %13, %arg1 : i32
    %17 = arith.addi %15, %16 : i32
    %c4_i32 = arith.constant 4 : i32
    %18 = arith.muli %17, %c4_i32 : i32
    %c0_11 = arith.constant 0 : index
    %c0_12 = arith.constant 0 : index
    %19 = vector.load %arg8[%c0_11, %c0_12] : memref<8x128xf32, #tpu.memory_space<vmem>>, vector<8x128xf32>
    %c0_13 = arith.constant 0 : index
    %c0_14 = arith.constant 0 : index
    %20 = vector.load %arg9[%c0_13, %c0_14] : memref<8x128xf32, #tpu.memory_space<vmem>>, vector<8x128xf32>
    %c0_i32_15 = arith.constant 0 : i32
    %c4_i32_16 = arith.constant 4 : i32
    %21 = arith.addi %c0_i32_15, %c4_i32_16 : i32
    %c1_i32_17 = arith.constant 1 : i32
    %22:2 = scf.for %arg10 = %c0_i32_15 to %21 step %c1_i32_17 iter_args(%arg11 = %19, %arg12 = %20) -> (vector<8x128xf32>, vector<8x128xf32>)  : i32 {
      %25 = arith.muli %13, %arg10 : i32
      %26 = arith.addi %14, %25 : i32
      %27 = arith.addi %18, %26 : i32
      %c10_i32 = arith.constant 10 : i32
      %28 = arith.cmpi slt, %27, %c10_i32 : i32
      %c8_i32 = arith.constant 8 : i32
      %29 = arith.muli %26, %c8_i32 : i32
      %30 = tpu.assume_multiple %29, 8 : i32
      %31 = arith.index_cast %30 : i32 to index
      %c0_23 = arith.constant 0 : index
      %32 = vector.load %arg7[%31, %c0_23] : memref<32x512xf32, #tpu.memory_space<vmem>>, vector<8x512xf32>
      %33 = arith.truncf %arg11 : vector<8x128xf32> to vector<8x128xbf16>
      %c0_24 = arith.constant 0 : index
      %c0_25 = arith.constant 0 : index
      %c0_26 = arith.constant 0 : index
      %34 = vector.load %arg4[%c0_24, %c0_25, %c0_26] : memref<1x128x512xbf16, #tpu.memory_space<vmem>>, vector<1x128x512xbf16>
      %35 = vector.shape_cast %34 : vector<1x128x512xbf16> to vector<128x512xbf16>
      %cst_27 = arith.constant dense<0.000000e+00> : vector<8x512xf32>
      %36 = tpu.matmul %33, %35, %cst_27 {dimension_numbers = #tpu.dot_dimension_numbers<[1], [0], [0], [1], [0, 0, 1, 1], [], []>} : vector<8x128xbf16>, vector<128x512xbf16>, vector<8x512xf32> -> vector<8x512xf32>
      %37 = arith.addf %32, %36 : vector<8x512xf32>
      %38 = vector.extract_strided_slice %37 {offsets = [0, 0], sizes = [8, 128], strides = [1, 1]} : vector<8x512xf32> to vector<8x128xf32>
      %cst_28 = arith.constant 2.000000e-01 : f32
      %39 = vector.broadcast %cst_28 : f32 to vector<8x128xf32>
      %40 = arith.mulf %39, %38 : vector<8x128xf32>
      %cst_29 = arith.constant 5.000000e-01 : f32
      %41 = vector.broadcast %cst_29 : f32 to vector<8x128xf32>
      %42 = arith.addf %40, %41 : vector<8x128xf32>
      %cst_30 = arith.constant 0.000000e+00 : f32
      %cst_31 = arith.constant 1.000000e+00 : f32
      %43 = vector.broadcast %cst_30 : f32 to vector<8x128xf32>
      %44 = arith.maximumf %43, %42 : vector<8x128xf32>
      %45 = vector.broadcast %cst_31 : f32 to vector<8x128xf32>
      %46 = arith.minimumf %45, %44 : vector<8x128xf32>
      %47 = vector.extract_strided_slice %37 {offsets = [0, 128], sizes = [8, 128], strides = [1, 1]} : vector<8x512xf32> to vector<8x128xf32>
      %cst_32 = arith.constant 2.000000e-01 : f32
      %48 = vector.broadcast %cst_32 : f32 to vector<8x128xf32>
      %49 = arith.mulf %48, %47 : vector<8x128xf32>
      %cst_33 = arith.constant 5.000000e-01 : f32
      %50 = vector.broadcast %cst_33 : f32 to vector<8x128xf32>
      %51 = arith.addf %49, %50 : vector<8x128xf32>
      %cst_34 = arith.constant 0.000000e+00 : f32
      %cst_35 = arith.constant 1.000000e+00 : f32
      %52 = vector.broadcast %cst_34 : f32 to vector<8x128xf32>
      %53 = arith.maximumf %52, %51 : vector<8x128xf32>
      %54 = vector.broadcast %cst_35 : f32 to vector<8x128xf32>
      %55 = arith.minimumf %54, %53 : vector<8x128xf32>
      %56 = vector.extract_strided_slice %37 {offsets = [0, 256], sizes = [8, 128], strides = [1, 1]} : vector<8x512xf32> to vector<8x128xf32>
      %cst_36 = arith.constant 2.000000e-01 : f32
      %57 = vector.broadcast %cst_36 : f32 to vector<8x128xf32>
      %58 = arith.mulf %57, %56 : vector<8x128xf32>
      %cst_37 = arith.constant 5.000000e-01 : f32
      %59 = vector.broadcast %cst_37 : f32 to vector<8x128xf32>
      %60 = arith.addf %58, %59 : vector<8x128xf32>
      %cst_38 = arith.constant 0.000000e+00 : f32
      %cst_39 = arith.constant 1.000000e+00 : f32
      %61 = vector.broadcast %cst_38 : f32 to vector<8x128xf32>
      %62 = arith.maximumf %61, %60 : vector<8x128xf32>
      %63 = vector.broadcast %cst_39 : f32 to vector<8x128xf32>
      %64 = arith.minimumf %63, %62 : vector<8x128xf32>
      %65 = vector.extract_strided_slice %37 {offsets = [0, 384], sizes = [8, 128], strides = [1, 1]} : vector<8x512xf32> to vector<8x128xf32>
      %66 = math.absf %65 : vector<8x128xf32>
      %cst_40 = arith.constant 1.000000e+00 : f32
      %67 = vector.broadcast %cst_40 : f32 to vector<8x128xf32>
      %68 = arith.addf %67, %66 : vector<8x128xf32>
      %69 = tpu.reciprocal %68 {approx = true} : vector<8x128xf32> -> vector<8x128xf32>
      %70 = arith.mulf %65, %69 : vector<8x128xf32>
      %71 = arith.mulf %55, %arg12 : vector<8x128xf32>
      %72 = arith.mulf %46, %70 : vector<8x128xf32>
      %73 = arith.addf %71, %72 : vector<8x128xf32>
      %74 = math.absf %73 : vector<8x128xf32>
      %cst_41 = arith.constant 1.000000e+00 : f32
      %75 = vector.broadcast %cst_41 : f32 to vector<8x128xf32>
      %76 = arith.addf %75, %74 : vector<8x128xf32>
      %77 = tpu.reciprocal %76 {approx = true} : vector<8x128xf32> -> vector<8x128xf32>
      %78 = arith.mulf %73, %77 : vector<8x128xf32>
      %79 = arith.mulf %64, %78 : vector<8x128xf32>
      %80 = arith.select %28, %73, %arg12 : vector<8x128xf32>
      %81 = arith.select %28, %79, %arg11 : vector<8x128xf32>
      %82 = arith.truncf %81 : vector<8x128xf32> to vector<8x128xbf16>
      %c0_42 = arith.constant 0 : index
      %83 = arith.index_cast %30 : i32 to index
      %c0_43 = arith.constant 0 : index
      %84 = vector.load %arg6[%c0_42, %83, %c0_43] : memref<1x32x128xbf16, #tpu.memory_space<vmem>>, vector<1x8x128xbf16>
      %85 = vector.shape_cast %84 : vector<1x8x128xbf16> to vector<8x128xbf16>
      %86 = vector.shape_cast %82 : vector<8x128xbf16> to vector<1x8x128xbf16>
      tpu.vector_store %arg6[%c0_42, %83, %c0_43], %86 {strides = array<i32>} : memref<1x32x128xbf16, #tpu.memory_space<vmem>>, vector<1x8x128xbf16>,
      scf.yield %81, %80 : vector<8x128xf32>, vector<8x128xf32>
    }
    %c4_i32_18 = arith.constant 4 : i32
    %c0_19 = arith.constant 0 : index
    %c0_20 = arith.constant 0 : index
    %23 = vector.load %arg8[%c0_19, %c0_20] : memref<8x128xf32, #tpu.memory_space<vmem>>, vector<8x128xf32>
    tpu.vector_store %arg8[%c0_19, %c0_20], %22#0 {strides = array<i32>} : memref<8x128xf32, #tpu.memory_space<vmem>>, vector<8x128xf32>,
    %c0_21 = arith.constant 0 : index
    %c0_22 = arith.constant 0 : index
    %24 = vector.load %arg9[%c0_21, %c0_22] : memref<8x128xf32, #tpu.memory_space<vmem>>, vector<8x128xf32>
    tpu.vector_store %arg9[%c0_21, %c0_22], %22#1 {strides = array<i32>} : memref<8x128xf32, #tpu.memory_space<vmem>>, vector<8x128xf32>,
    return
  }
  func.func @transform_0(%arg0: i32, %arg1: i32) -> (i32, i32) {
    %c2_i32 = arith.constant 2 : i32
    %0 = arith.muli %arg0, %c2_i32 : i32
    %c2_i32_0 = arith.constant 2 : i32
    %1 = arith.muli %c2_i32_0, %arg0 : i32
    %c1_i32 = arith.constant 1 : i32
    %2 = arith.subi %c1_i32, %1 : i32
    %3 = arith.muli %2, %arg1 : i32
    %4 = arith.addi %0, %3 : i32
    %c0_i32 = arith.constant 0 : i32
    %c0_i32_1 = arith.constant 0 : i32
    return %4, %c0_i32 : i32, i32
  }
  func.func @transform_1(%arg0: i32, %arg1: i32) -> (i32, i32, i32) {
    %c0_i32 = arith.constant 0 : i32
    %c0_i32_0 = arith.constant 0 : i32
    %c0_i32_1 = arith.constant 0 : i32
    return %arg0, %c0_i32, %c0_i32_0 : i32, i32, i32
  }
  func.func @transform_2(%arg0: i32, %arg1: i32) -> (i32, i32, i32) {
    %c0_i32 = arith.constant 0 : i32
    %c0_i32_0 = arith.constant 0 : i32
    %c0_i32_1 = arith.constant 0 : i32
    return %arg0, %c0_i32, %c0_i32_0 : i32, i32, i32
  }
  func.func @transform_3(%arg0: i32, %arg1: i32) -> (i32, i32, i32) {
    %c0_i32 = arith.constant 0 : i32
    %c0_i32_0 = arith.constant 0 : i32
    %c0_i32_1 = arith.constant 0 : i32
    return %arg0, %c0_i32, %c0_i32_0 : i32, i32, i32
  }
  func.func @transform_4(%arg0: i32, %arg1: i32) -> (i32, i32, i32) {
    %c2_i32 = arith.constant 2 : i32
    %0 = arith.muli %arg0, %c2_i32 : i32
    %c2_i32_0 = arith.constant 2 : i32
    %1 = arith.muli %c2_i32_0, %arg0 : i32
    %c1_i32 = arith.constant 1 : i32
    %2 = arith.subi %c1_i32, %1 : i32
    %3 = arith.muli %2, %arg1 : i32
    %4 = arith.addi %0, %3 : i32
    %c0_i32 = arith.constant 0 : i32
    %c0_i32_1 = arith.constant 0 : i32
    return %arg0, %4, %c0_i32 : i32, i32, i32
  }
}

</mosaic_0001>

<llo_original>
// kernel: tpu_custom_call.1
$region0: #{tpu_custom_call.1}
  #allocation0 [shape = 'u32[]', space=smem, size = 0x4, offset = 0x4, fixed_abs, tag = 'smem constant byte address 0x4 - core index']
  #allocation1 [shape = 'u32[72,128]{1,0:T(1,128)}', space=vmem, size = 0x9000, scoped, tag = 'internal scratch']
  #allocation2 [shape = 'f32[32,512]{1,0:T(8,128)}', space=vmem, size = 0x10000, scoped, tag = 'scratch operand']
  #allocation3 [shape = 'f32[8,128]{1,0:T(8,128)}', space=vmem, size = 0x1000, scoped, tag = 'scratch operand']
  #allocation4 [shape = 'f32[8,128]{1,0:T(8,128)}', space=vmem, size = 0x1000, scoped, tag = 'scratch operand']
  %s0 = inlined_call_operand.vmem [shape: bf16[96,16], index: 0, kind: input, shape index: {}]
  %s1 = inlined_call_operand.hbm [shape: bf16[2,16,512], index: 1, kind: input, shape index: {}]
  %s2 = inlined_call_operand.hbm [shape: bf16[2,128,512], index: 2, kind: input, shape index: {}]
  %s3 = inlined_call_operand.vmem [shape: f32[2,1,512], index: 3, kind: input, shape index: {}]
  %s4 = inlined_call_operand.hbm [shape: bf16[2,96,128], index: 4, kind: output, shape index: {}]
  %s5 = sld [smem:[#allocation0]]
  $region68: #{tpu_custom_call.1} parent=0
    _
  %s7 = ssub.s32 1, %s5
  %s8 = scalar_select 0, %s7, %s5
  $region1: #{tpu_custom_call.1} parent=0
    #allocation5 [shape = 'u8[32768]{0}', space=vmem, size = 0x8000, scoped, tag = 'input window, operand 1']
    #allocation6 [shape = 's32[2]{0}', space=sflag, size = 0x8, scoped, tag = 'scoped memory for tpu_custom_call.1']
    #allocation7 [shape = 's32[2]{0}', space=sflag, size = 0x8, scoped, tag = 'scoped memory for tpu_custom_call.1']
    #allocation8 [shape = 'u8[262144]{0}', space=vmem, size = 0x40000, scoped, tag = 'input window, operand 2']
    #allocation9 [shape = 's32[2]{0}', space=sflag, size = 0x8, scoped, tag = 'scoped memory for tpu_custom_call.1']
    #allocation10 [shape = 'u8[16384]{0}', space=vmem, size = 0x4000, scoped, tag = 'output window, operand 0']
    %9 = vsyncpa [#allocation6], 0
    %s10 = scalar_lea.sflag [#allocation6], 1
    %11 = vsyncpa %s10, 0
    %12 = vsyncpa [#allocation9], 0
    %s13 = scalar_lea.sflag [#allocation9], 1
    %14 = vsyncpa %s13, 0
    %15 = vsyncpa [#allocation7], 0
    %s16 = scalar_lea.sflag [#allocation7], 1
    %17 = vsyncpa %s16, 0
    loop: start=0, step=1, limit=8
    $region2: #{tpu_custom_call.1} parent=1 // loop_pre_header
      _
    $region3: #{tpu_custom_call.1} parent=1 // loop_header
      %s19 = sphi 0, %s23
      %p20 = scmp.ge.s32.totalorder %s19, 8
      %s26 = sphi 0, %s38
      %s27 = sphi 0, %s34
      %s28 = sphi 0, %s26
      %s29 = sphi 0, %s27
      %s30 = sphi 0, %s28
      %s31 = sphi 0, %s29
      %s49 = sphi 0, %s51
      %s52 = sphi 0, %s49
      %s53 = sphi 0, %s52
      %s69 = sphi 0, %s53
      %s75 = sphi 0, %s77
      %s78 = sphi 0, %s75
      %s79 = sphi 0, %s78
      %s95 = sphi 0, %s79
      %s101 = sphi 0, %s103
      %s104 = sphi 0, %s101
      %s105 = sphi 0, %s104
      %s121 = sphi 0, %s105
      %s127 = sphi 0, %s129
      %s130 = sphi 0, %s127
      %s131 = sphi 0, %s130
      %s147 = sphi 0, %s131
      %s163 = sphi 0, %s165
      %s166 = sphi 0, %s163
      %s167 = sphi 0, %s166
      %s183 = sphi 0, %s167
    $region4: #{tpu_custom_call.1} parent=1 // loop_header_branch
      %22 = sbr.rel (%p20) target = $region8
    $region5: #{tpu_custom_call.1} parent=1 // loop_body
      %s24 = ssub.s32 %s19, 1
      %s25 = ssub.s32 %s19, 2
      %s32 = sadd.s32 1, %s27
      %p33 = scmp.ge.s32.totalorder %s32, 3
      %s34 = scalar_select %p33, 0, %s32
      %s35 = sadd.s32 1, %s26
      %s36 = scalar_select %p33, %s35, %s26
      %p37 = scmp.ge.s32.totalorder %s36, 2
      %s38 = scalar_select %p37, 0, %s36
      %s39 = smul.u32 %s26, 2
      %s40 = ssub.s32 1, %s39
      %s41 = smul.u32 %s40, %s27
      %s42 = sadd.s32 %s39, %s41
      %s43 = smul.u32 %s38, 2
      %s44 = ssub.s32 1, %s43
      %s45 = smul.u32 %s44, %s34
      %s46 = sadd.s32 %s43, %s45
      %s47 = ssub.s32 %s42, %s46
      %p48 = scmp.eq.s32.totalorder %s47, 0
      %s50 = sadd.s32 %s49, 1
      %s51 = scalar_select %p48, %s49, %s50
      %p54 = pneg %p48
      %p55 = scmp.eq.s32.totalorder %s19, 5
      %p56 = por %p54, %p55
      %p57 = scmp.ne.s32.totalorder %s49, %s52
      %p58 = scmp.eq.s32.totalorder %s19, 0
      %p59 = por %p57, %p58
      %p60 = scmp.ne.s32.totalorder %s49, %s52
      %p61 = scmp.eq.s32.totalorder %s24, 5
      %p62 = por %p60, %p61
      %p63 = scmp.ne.s32.totalorder %s52, %s53
      %p64 = scmp.eq.s32.totalorder %s24, 0
      %p65 = por %p63, %p64
      %p66 = scmp.ne.s32.totalorder %s52, %s53
      %p67 = scmp.eq.s32.totalorder %s25, 5
      %p68 = por %p66, %p67
      %p70 = scmp.ne.s32.totalorder %s53, %s69
      %p71 = scmp.eq.s32.totalorder %s25, 0
      %p72 = por %p70, %p71
      %s73 = ssub.s32 %s26, %s38
      %p74 = scmp.eq.s32.totalorder %s73, 0
      %s76 = sadd.s32 %s75, 1
      %s77 = scalar_select %p74, %s75, %s76
      %p80 = pneg %p74
      %p81 = scmp.eq.s32.totalorder %s19, 5
      %p82 = por %p80, %p81
      %p83 = scmp.ne.s32.totalorder %s75, %s78
      %p84 = scmp.eq.s32.totalorder %s19, 0
      %p85 = por %p83, %p84
      %p86 = scmp.ne.s32.totalorder %s75, %s78
      %p87 = scmp.eq.s32.totalorder %s24, 5
      %p88 = por %p86, %p87
      %p89 = scmp.ne.s32.totalorder %s78, %s79
      %p90 = scmp.eq.s32.totalorder %s24, 0
      %p91 = por %p89, %p90
      %p92 = scmp.ne.s32.totalorder %s78, %s79
      %p93 = scmp.eq.s32.totalorder %s25, 5
      %p94 = por %p92, %p93
      %p96 = scmp.ne.s32.totalorder %s79, %s95
      %p97 = scmp.eq.s32.totalorder %s25, 0
      %p98 = por %p96, %p97
      %s99 = ssub.s32 %s26, %s38
      %p100 = scmp.eq.s32.totalorder %s99, 0
      %s102 = sadd.s32 %s101, 1
      %s103 = scalar_select %p100, %s101, %s102
      %p106 = pneg %p100
      %p107 = scmp.eq.s32.totalorder %s19, 5
      %p108 = por %p106, %p107
      %p109 = scmp.ne.s32.totalorder %s101, %s104
      %p110 = scmp.eq.s32.totalorder %s19, 0
      %p111 = por %p109, %p110
      %p112 = scmp.ne.s32.totalorder %s101, %s104
      %p113 = scmp.eq.s32.totalorder %s24, 5
      %p114 = por %p112, %p113
      %p115 = scmp.ne.s32.totalorder %s104, %s105
      %p116 = scmp.eq.s32.totalorder %s24, 0
      %p117 = por %p115, %p116
      %p118 = scmp.ne.s32.totalorder %s104, %s105
      %p119 = scmp.eq.s32.totalorder %s25, 5
      %p120 = por %p118, %p119
      %p122 = scmp.ne.s32.totalorder %s105, %s121
      %p123 = scmp.eq.s32.totalorder %s25, 0
      %p124 = por %p122, %p123
      %s125 = ssub.s32 %s26, %s38
      %p126 = scmp.eq.s32.totalorder %s125, 0
      %s128 = sadd.s32 %s127, 1
      %s129 = scalar_select %p126, %s127, %s128
      %p132 = pneg %p126
      %p133 = scmp.eq.s32.totalorder %s19, 5
      %p134 = por %p132, %p133
      %p135 = scmp.ne.s32.totalorder %s127, %s130
      %p136 = scmp.eq.s32.totalorder %s19, 0
      %p137 = por %p135, %p136
      %p138 = scmp.ne.s32.totalorder %s127, %s130
      %p139 = scmp.eq.s32.totalorder %s24, 5
      %p140 = por %p138, %p139
      %p141 = scmp.ne.s32.totalorder %s130, %s131
      %p142 = scmp.eq.s32.totalorder %s24, 0
      %p143 = por %p141, %p142
      %p144 = scmp.ne.s32.totalorder %s130, %s131
      %p145 = scmp.eq.s32.totalorder %s25, 5
      %p146 = por %p144, %p145
      %p148 = scmp.ne.s32.totalorder %s131, %s147
      %p149 = scmp.eq.s32.totalorder %s25, 0
      %p150 = por %p148, %p149
      %s151 = smul.u32 %s26, 2
      %s152 = ssub.s32 1, %s151
      %s153 = smul.u32 %s152, %s27
      %s154 = sadd.s32 %s151, %s153
      %s155 = smul.u32 %s38, 2
      %s156 = ssub.s32 1, %s155
      %s157 = smul.u32 %s156, %s34
      %s158 = sadd.s32 %s155, %s157
      %s159 = ssub.s32 %s26, %s38
      %s160 = ssub.s32 %s154, %s158
      %s161 = sor.u32 %s159, %s160
      %p162 = scmp.eq.s32.totalorder %s161, 0
      %s164 = sadd.s32 %s163, 1
      %s165 = scalar_select %p162, %s163, %s164
      %p168 = pneg %p162
      %p169 = scmp.eq.s32.totalorder %s19, 5
      %p170 = por %p168, %p169
      %p171 = scmp.ne.s32.totalorder %s163, %s166
      %p172 = scmp.eq.s32.totalorder %s19, 0
      %p173 = por %p171, %p172
      %p174 = scmp.ne.s32.totalorder %s163, %s166
      %p175 = scmp.eq.s32.totalorder %s24, 5
      %p176 = por %p174, %p175
      %p177 = scmp.ne.s32.totalorder %s166, %s167
      %p178 = scmp.eq.s32.totalorder %s24, 0
      %p179 = por %p177, %p178
      %p180 = scmp.ne.s32.totalorder %s166, %s167
      %p181 = scmp.eq.s32.totalorder %s25, 5
      %p182 = por %p180, %p181
      %p184 = scmp.ne.s32.totalorder %s167, %s183
      %p185 = scmp.eq.s32.totalorder %s25, 0
      %p186 = por %p184, %p185
      %p187 = scmp.le.s32.totalorder 1, %s19
      %p188 = scmp.lt.s32.totalorder %s19, 7
      %p189 = pnand %p187, %p188
      %p190 = pneg %p189
      // Predicated region
      $region9: #{tpu_custom_call.1} parent=5 // pred_check
        _
      $region10: #{tpu_custom_call.1} parent=5 // pred_check_branch
        %192 = sbr.rel (%p189) target = $region12
      $region11: #{tpu_custom_call.1} parent=5 // pred_region
        %s193 = ssub.s32 %s19, 1
      $region12: #{tpu_custom_call.1} parent=5 // pred_fallthru
        _
      %p194 = scmp.lt.s32.totalorder %s19, 6
      // Predicated region
      $region13: #{tpu_custom_call.1} parent=5 // pred_check
        %p195 = pneg %p194
      $region14: #{tpu_custom_call.1} parent=5 // pred_check_branch
        %197 = sbr.rel (%p195) target = $region16
      $region15: #{tpu_custom_call.1} parent=5 // pred_region
        // Predicated region
        $region17: #{tpu_custom_call.1} parent=15 // pred_check
          %p198 = pneg %p59
        $region18: #{tpu_custom_call.1} parent=15 // pred_check_branch
          %200 = sbr.rel (%p198) target = $region20
        $region19: #{tpu_custom_call.1} parent=15 // pred_region
          %s201 = smul.u32 %s26, 2
          %s202 = ssub.s32 1, %s201
          %s203 = smul.u32 %s202, %s27
          %s204 = sadd.s32 %s201, %s203
          %s205 = smul.u32 4, %s204
          %p206 = scmp.lt.s32.totalorder %s205, 11
          %s207 = scalar_select %p206, %s205, 11
          %s208 = smul.addr %s207, 4
          %s209 = scalar_lea.vmem %s0, %s208
          %s210 = smul.u32 %s26, 2
          %s211 = ssub.s32 1, %s210
          %s212 = smul.u32 %s211, %s27
          %s213 = sadd.s32 %s210, %s212
          %s214 = smul.u32 4, %s213
        $region20: #{tpu_custom_call.1} parent=15 // pred_fallthru
          _
        // Predicated region
        $region21: #{tpu_custom_call.1} parent=15 // pred_check
          %p215 = pneg %p85
        $region22: #{tpu_custom_call.1} parent=15 // pred_check_branch
          %217 = sbr.rel (%p215) target = $region24
        $region23: #{tpu_custom_call.1} parent=15 // pred_region
          %s218 = sand.u32 %s75, 1
          %s219 = scalar_lea.sflag [#allocation6], %s218
          %s220 = sand.u32 %s75, 1
          %s221 = smul.addr %s220, 32
          %s222 = scalar_lea.vmem [#allocation5], %s221
          %224 = vsyncadd %s219, 0
          %s225 = smul.addr %s26, 8
          %s226 = smul.addr %s225, 4
          %s227 = scalar_lea.hbm %s1, %s226
          %s228 = sshll.u32 %s227, 4
          %s229 = int_to_ptr.hbm [resolvable:$true] %s228
          %s230 = sshll.u32 %s222, 4
          %s231 = int_to_ptr.vmem [resolvable:$true] %s230
          %236 = dma.hbm_to_vmem [thread:$0]  %s229, 512, %s231, %s219, 256, 256, 16
        $region24: #{tpu_custom_call.1} parent=15 // pred_fallthru
          _
        // Predicated region
        $region25: #{tpu_custom_call.1} parent=15 // pred_check
          %p237 = pneg %p111
        $region26: #{tpu_custom_call.1} parent=15 // pred_check_branch
          %239 = sbr.rel (%p237) target = $region28
        $region27: #{tpu_custom_call.1} parent=15 // pred_region
          %s240 = sand.u32 %s101, 1
          %s241 = scalar_lea.sflag [#allocation9], %s240
          %s242 = sand.u32 %s101, 1
          %s243 = smul.addr %s242, 256
          %s244 = scalar_lea.vmem [#allocation8], %s243
          %246 = vsyncadd %s241, 0
          %s247 = smul.addr %s26, 64
          %s248 = smul.addr %s247, 4
          %s249 = scalar_lea.hbm %s2, %s248
          %s250 = sshll.u32 %s249, 4
          %s251 = int_to_ptr.hbm [resolvable:$true] %s250
          %s252 = sshll.u32 %s244, 4
          %s253 = int_to_ptr.vmem [resolvable:$true] %s252
          %258 = dma.hbm_to_vmem [thread:$0]  %s251, 4096, %s253, %s241, 256, 256, 16
        $region28: #{tpu_custom_call.1} parent=15 // pred_fallthru
          _
        // Predicated region
        $region29: #{tpu_custom_call.1} parent=15 // pred_check
          %p259 = pneg %p137
        $region30: #{tpu_custom_call.1} parent=15 // pred_check_branch
          %261 = sbr.rel (%p259) target = $region32
        $region31: #{tpu_custom_call.1} parent=15 // pred_region
          %p262 = scmp.lt.s32.totalorder %s26, 1
          %s263 = scalar_select %p262, %s26, 1
          %s264 = smul.addr %s263, 4
          %s265 = scalar_lea.vmem %s3, %s264
        $region32: #{tpu_custom_call.1} parent=15 // pred_fallthru
          _
      $region16: #{tpu_custom_call.1} parent=5 // pred_fallthru
        _
      %p266 = scmp.le.s32.totalorder 1, %s19
      %p267 = scmp.lt.s32.totalorder %s19, 7
      %p268 = pnand %p266, %p267
      %p269 = pneg %p268
      // Predicated region
      $region33: #{tpu_custom_call.1} parent=5 // pred_check
        _
      $region34: #{tpu_custom_call.1} parent=5 // pred_check_branch
        %271 = sbr.rel (%p268) target = $region36
      $region35: #{tpu_custom_call.1} parent=5 // pred_region
        %s272 = ssub.s32 %s19, 1
        %s273 = sand.u32 %s78, 1
        %s274 = scalar_lea.sflag [#allocation6], %s273
        %s275 = sand.u32 %s78, 1
        %s276 = smul.addr %s275, 32
        %s277 = scalar_lea.vmem [#allocation5], %s276
        // Predicated region
        $region37: #{tpu_custom_call.1} parent=35 // pred_check
          %p278 = pneg %p91
        $region38: #{tpu_custom_call.1} parent=35 // pred_check_branch
          %280 = sbr.rel (%p278) target = $region40
        $region39: #{tpu_custom_call.1} parent=35 // pred_region
          %282 = dma.done %s274, 512
        $region40: #{tpu_custom_call.1} parent=35 // pred_fallthru
          _
        %s283 = sand.u32 %s104, 1
        %s284 = scalar_lea.sflag [#allocation9], %s283
        %s285 = sand.u32 %s104, 1
        %s286 = smul.addr %s285, 256
        %s287 = scalar_lea.vmem [#allocation8], %s286
        // Predicated region
        $region41: #{tpu_custom_call.1} parent=35 // pred_check
          %p288 = pneg %p117
        $region42: #{tpu_custom_call.1} parent=35 // pred_check_branch
          %290 = sbr.rel (%p288) target = $region44
        $region43: #{tpu_custom_call.1} parent=35 // pred_region
          %292 = dma.done %s284, 4096
        $region44: #{tpu_custom_call.1} parent=35 // pred_fallthru
          _
        %s293 = smul.u32 %s28, 2
        %s294 = ssub.s32 1, %s293
        %s295 = smul.u32 %s294, %s29
        %s296 = sadd.s32 %s293, %s295
        %s297 = smul.u32 4, %s296
        %p298 = scmp.lt.s32.totalorder %s297, 11
        %s299 = scalar_select %p298, %s297, 11
        %s300 = smul.addr %s299, 4
        %s301 = scalar_lea.vmem %s0, %s300
        %p302 = pneg %p65
        %p303 = pneg %p62
        %s304 = sand.u32 %s78, 1
        %s305 = scalar_lea.sflag [#allocation6], %s304
        %s306 = sand.u32 %s78, 1
        %s307 = smul.addr %s306, 32
        %s308 = scalar_lea.vmem [#allocation5], %s307
        %p309 = pneg %p91
        %p310 = pneg %p88
        %s311 = sand.u32 %s104, 1
        %s312 = scalar_lea.sflag [#allocation9], %s311
        %s313 = sand.u32 %s104, 1
        %s314 = smul.addr %s313, 256
        %s315 = scalar_lea.vmem [#allocation8], %s314
        %p316 = pneg %p117
        %p317 = pneg %p114
        %p318 = scmp.lt.s32.totalorder %s28, 1
        %s319 = scalar_select %p318, %s28, 1
        %s320 = smul.addr %s319, 4
        %s321 = scalar_lea.vmem %s3, %s320
        %p322 = pneg %p143
        %p323 = pneg %p140
        %p324 = pneg %p179
        %p325 = pneg %p176
        %s326 = sand.u32 %s166, 1
        %s327 = scalar_lea.sflag [#allocation7], %s326
        %s328 = sand.u32 %s166, 1
        %s329 = smul.addr %s328, 16
        %s330 = scalar_lea.vmem [#allocation10], %s329
        %s331 = smul.u32 %s28, 2
        %s332 = ssub.s32 1, %s331
        %s333 = smul.u32 %s332, %s29
        %s334 = sadd.s32 %s331, %s333
        %s335 = smul.u32 4, %s334
        %p336 = scmp.lt.s32.totalorder %s335, 11
        %s337 = scalar_select %p336, %s335, 11
        %s338 = smul.addr %s337, 4
        %s339 = scalar_lea.vmem %s0, %s338
        %s340 = smul.u32 %s28, 2
        %s341 = ssub.s32 1, %s340
        %s342 = smul.u32 %s341, %s29
        %s343 = sadd.s32 %s340, %s342
        %s344 = smul.u32 4, %s343
        %p345 = scmp.lt.s32.totalorder %s28, 1
        %s346 = scalar_select %p345, %s28, 1
        %s347 = smul.addr %s346, 4
        %s348 = scalar_lea.vmem %s3, %s347
        %s349 = smul.u32 %s28, 2
        %s350 = ssub.s32 1, %s349
        %s351 = smul.u32 %s350, %s29
        %s352 = sadd.s32 %s349, %s351
        %s353 = smul.u32 4, %s352
        %p355 = scmp.eq.s32.totalorder %s29, 0
        // Predicated region
        $region45: #{tpu_custom_call.1} parent=35 // pred_check
          %p356 = pneg %p355
        $region46: #{tpu_custom_call.1} parent=35 // pred_check_branch
          %358 = sbr.rel (%p356) target = $region48
        $region47: #{tpu_custom_call.1} parent=35 // pred_region
          %359 = vst [vmem:[#allocation3] sm:$0xff] 0.0
          %360 = vst [vmem:[#allocation4] sm:$0xff] 0.0
        $region48: #{tpu_custom_call.1} parent=35 // pred_fallthru
          _
        %v361 = vld [vmem:[%s339] sm:$0xf]
        %v362 = vld [vmem:[%s339 + $0x4] sm:$0xf]
        %v363 = vld [vmem:[%s339 + $0x8] sm:$0xf]
        %v364 = vld [vmem:[%s339 + $0xc] sm:$0xf]
        %v365 = vld [vmem:[%s277] sm:$0xff]
        %v366 = vld [vmem:[%s277 + $0x8] sm:$0xff]
        %v367 = vld [vmem:[%s277 + $0x10] sm:$0xff]
        %v368 = vld [vmem:[%s277 + $0x18] sm:$0xff]
        %v369 = vld [vmem:[%s348] sm:$0xf]
        %v371 = vperm.slane %v369, 0
        %v372 = vperm.slane %v369, 1
        %v373 = vperm.slane %v369, 2
        %v374 = vperm.slane %v369, 3
        %v383 = vunpack.c.l.b16 %v361
        %v384 = vunpack.c.l.b16 %v362
        %v385 = vunpack.c.l.b16 %v363
        %v386 = vunpack.c.l.b16 %v364
        %v387 = vpack.c.b16 %v384, %v383
        %v388 = vpack.c.b16 %v386, %v385
        %v393 = vunpack.c.l.b16 %v365
        %v394 = vunpack.c.h.b16 %v365
        %v395 = vunpack.c.l.b16 %v366
        %v396 = vunpack.c.h.b16 %v366
        %v397 = vunpack.c.l.b16 %v367
        %v398 = vunpack.c.h.b16 %v367
        %v399 = vunpack.c.l.b16 %v368
        %v400 = vunpack.c.h.b16 %v368
        %v401 = vpack.c.b16 %v397, %v393
        %v402 = vpack.c.b16 %v398, %v394
        %v403 = vpack.c.b16 %v399, %v395
        %v404 = vpack.c.b16 %v400, %v396
        %vm409 = vcmask 130048
        %v411 = vsel %vm409, %v387, 0
        %v414 = vsel %vm409, %v388, 0
        %416 = vmatpush.bf16.msra.mxu0 0
        %417 = vmatpush.bf16.msra.mxu0 0
        %418 = vmatpush.bf16.msra.mxu0 0
        %419 = vmatpush.bf16.msra.mxu0 0
        %420 = vmatpush.bf16.msra.mxu0 0
        %421 = vmatpush.bf16.msra.mxu0 0
        %422 = vmatpush.bf16.msra.mxu0 0
        %423 = vmatpush.bf16.msra.mxu0 %v401
        %424 = vmatmul.bf16.gmra.mxu0 %v411
        %v425 = vpop.f32.mrf.mxu0
        %v426 = vadd.f32 %v371, %v425
        %v427 = vpop.f32.mrf.mxu0
        %v428 = vadd.f32 %v371, %v427
        %429 = vmatmul.bf16.gmra.mxu0 %v414
        %v430 = vpop.f32.mrf.mxu0
        %v431 = vadd.f32 %v371, %v430
        %v432 = vpop.f32.mrf.mxu0
        %v433 = vadd.f32 %v371, %v432
        %434 = vdwg.mxu0
        %435 = vmatpush.bf16.msra.mxu0 0
        %436 = vmatpush.bf16.msra.mxu0 0
        %437 = vmatpush.bf16.msra.mxu0 0
        %438 = vmatpush.bf16.msra.mxu0 0
        %439 = vmatpush.bf16.msra.mxu0 0
        %440 = vmatpush.bf16.msra.mxu0 0
        %441 = vmatpush.bf16.msra.mxu0 0
        %442 = vmatpush.bf16.msra.mxu0 %v402
        %443 = vmatmul.bf16.gmra.mxu0 %v411
        %v444 = vpop.f32.mrf.mxu0
        %v445 = vadd.f32 %v372, %v444
        %v446 = vpop.f32.mrf.mxu0
        %v447 = vadd.f32 %v372, %v446
        %448 = vmatmul.bf16.gmra.mxu0 %v414
        %v449 = vpop.f32.mrf.mxu0
        %v450 = vadd.f32 %v372, %v449
        %v451 = vpop.f32.mrf.mxu0
        %v452 = vadd.f32 %v372, %v451
        %453 = vdwg.mxu0
        %454 = vmatpush.bf16.msra.mxu0 0
        %455 = vmatpush.bf16.msra.mxu0 0
        %456 = vmatpush.bf16.msra.mxu0 0
        %457 = vmatpush.bf16.msra.mxu0 0
        %458 = vmatpush.bf16.msra.mxu0 0
        %459 = vmatpush.bf16.msra.mxu0 0
        %460 = vmatpush.bf16.msra.mxu0 0
        %461 = vmatpush.bf16.msra.mxu0 %v403
        %462 = vmatmul.bf16.gmra.mxu0 %v411
        %v463 = vpop.f32.mrf.mxu0
        %v464 = vadd.f32 %v373, %v463
        %v465 = vpop.f32.mrf.mxu0
        %v466 = vadd.f32 %v373, %v465
        %467 = vmatmul.bf16.gmra.mxu0 %v414
        %v468 = vpop.f32.mrf.mxu0
        %v469 = vadd.f32 %v373, %v468
        %v470 = vpop.f32.mrf.mxu0
        %v471 = vadd.f32 %v373, %v470
        %472 = vdwg.mxu0
        %473 = vmatpush.bf16.msra.mxu0 0
        %474 = vmatpush.bf16.msra.mxu0 0
        %475 = vmatpush.bf16.msra.mxu0 0
        %476 = vmatpush.bf16.msra.mxu0 0
        %477 = vmatpush.bf16.msra.mxu0 0
        %478 = vmatpush.bf16.msra.mxu0 0
        %479 = vmatpush.bf16.msra.mxu0 0
        %480 = vmatpush.bf16.msra.mxu0 %v404
        %481 = vmatmul.bf16.gmra.mxu0 %v411
        %v482 = vpop.f32.mrf.mxu0
        %v483 = vadd.f32 %v374, %v482
        %v484 = vpop.f32.mrf.mxu0
        %v485 = vadd.f32 %v374, %v484
        %486 = vmatmul.bf16.gmra.mxu0 %v414
        %v487 = vpop.f32.mrf.mxu0
        %v488 = vadd.f32 %v374, %v487
        %v489 = vpop.f32.mrf.mxu0
        %v490 = vadd.f32 %v374, %v489
        %491 = vdwg.mxu0
        %492 = vst [vmem:[#allocation2] sm:$0xff] %v426
        %493 = vst [vmem:[#allocation2 + $0x8] sm:$0xff] %v445
        %494 = vst [vmem:[#allocation2 + $0x10] sm:$0xff] %v464
        %495 = vst [vmem:[#allocation2 + $0x18] sm:$0xff] %v483
        %496 = vst [vmem:[#allocation2 + $0x20] sm:$0xff] %v428
        %497 = vst [vmem:[#allocation2 + $0x28] sm:$0xff] %v447
        %498 = vst [vmem:[#allocation2 + $0x30] sm:$0xff] %v466
        %499 = vst [vmem:[#allocation2 + $0x38] sm:$0xff] %v485
        %500 = vst [vmem:[#allocation2 + $0x40] sm:$0xff] %v431
        %501 = vst [vmem:[#allocation2 + $0x48] sm:$0xff] %v450
        %502 = vst [vmem:[#allocation2 + $0x50] sm:$0xff] %v469
        %503 = vst [vmem:[#allocation2 + $0x58] sm:$0xff] %v488
        %504 = vst [vmem:[#allocation2 + $0x60] sm:$0xff] %v433
        %505 = vst [vmem:[#allocation2 + $0x68] sm:$0xff] %v452
        %506 = vst [vmem:[#allocation2 + $0x70] sm:$0xff] %v471
        %507 = vst [vmem:[#allocation2 + $0x78] sm:$0xff] %v490
        %s508 = smul.u32 %s28, 2
        %s509 = ssub.s32 1, %s508
        %s510 = smul.u32 %s28, 3
        %s511 = smul.u32 %s509, %s29
        %s512 = sadd.s32 %s508, %s511
        %s513 = smul.u32 %s512, 4
        %v514 = vld [vmem:[#allocation3] sm:$0xff]
        %v515 = vld [vmem:[#allocation4] sm:$0xff]
        loop: start=0, step=1, limit=4
        $region49: #{tpu_custom_call.1} parent=35 // loop_pre_header
          _
        $region50: #{tpu_custom_call.1} parent=35 // loop_header
          %s517 = sphi 0, %s521
          %p518 = scmp.ge.s32.totalorder %s517, 4
          %v522 = vphi %v514, %v815
          %v523 = vphi %v515, %v814
        $region51: #{tpu_custom_call.1} parent=35 // loop_header_branch
          %520 = sbr.rel (%p518) target = $region55
        $region52: #{tpu_custom_call.1} parent=35 // loop_body
          %s524 = smul.u32 %s509, %s517
          %s525 = sadd.s32 %s510, %s524
          %s526 = sadd.s32 %s513, %s525
          %p527 = scmp.lt.s32.totalorder %s526, 10
          %s528 = smul.u32 %s525, 8
          %s529 = sshra.s32 %s528, 3
          %s530 = sand.u32 %s528, 7
          %s531 = smul.u32 %s529, 4
          %s532 = smul.addr %s531, 8
          %s533 = scalar_lea.vmem [#allocation2], %s532
          %v534 = vld [vmem:[%s533] sm:$0xff]
          %v535 = vld [vmem:[%s533 + $0x8] sm:$0xff]
          %v536 = vld [vmem:[%s533 + $0x10] sm:$0xff]
          %v537 = vld [vmem:[%s533 + $0x18] sm:$0xff]
          %v538 = vpack.c.bf16 %v522, %v522
          %v539 = vld [vmem:[%s287] sm:$0xff]
          %v540 = vld [vmem:[%s287 + $0x8] sm:$0xff]
          %v541 = vld [vmem:[%s287 + $0x10] sm:$0xff]
          %v542 = vld [vmem:[%s287 + $0x18] sm:$0xff]
          %v543 = vld [vmem:[%s287 + $0x20] sm:$0xff]
          %v544 = vld [vmem:[%s287 + $0x28] sm:$0xff]
          %v545 = vld [vmem:[%s287 + $0x30] sm:$0xff]
          %v546 = vld [vmem:[%s287 + $0x38] sm:$0xff]
          %v547 = vld [vmem:[%s287 + $0x40] sm:$0xff]
          %v548 = vld [vmem:[%s287 + $0x48] sm:$0xff]
          %v549 = vld [vmem:[%s287 + $0x50] sm:$0xff]
          %v550 = vld [vmem:[%s287 + $0x58] sm:$0xff]
          %v551 = vld [vmem:[%s287 + $0x60] sm:$0xff]
          %v552 = vld [vmem:[%s287 + $0x68] sm:$0xff]
          %v553 = vld [vmem:[%s287 + $0x70] sm:$0xff]
          %v554 = vld [vmem:[%s287 + $0x78] sm:$0xff]
          %v555 = vld [vmem:[%s287 + $0x80] sm:$0xff]
          %v556 = vld [vmem:[%s287 + $0x88] sm:$0xff]
          %v557 = vld [vmem:[%s287 + $0x90] sm:$0xff]
          %v558 = vld [vmem:[%s287 + $0x98] sm:$0xff]
          %v559 = vld [vmem:[%s287 + $0xa0] sm:$0xff]
          %v560 = vld [vmem:[%s287 + $0xa8] sm:$0xff]
          %v561 = vld [vmem:[%s287 + $0xb0] sm:$0xff]
          %v562 = vld [vmem:[%s287 + $0xb8] sm:$0xff]
          %v563 = vld [vmem:[%s287 + $0xc0] sm:$0xff]
          %v564 = vld [vmem:[%s287 + $0xc8] sm:$0xff]
          %v565 = vld [vmem:[%s287 + $0xd0] sm:$0xff]
          %v566 = vld [vmem:[%s287 + $0xd8] sm:$0xff]
          %v567 = vld [vmem:[%s287 + $0xe0] sm:$0xff]
          %v568 = vld [vmem:[%s287 + $0xe8] sm:$0xff]
          %v569 = vld [vmem:[%s287 + $0xf0] sm:$0xff]
          %v570 = vld [vmem:[%s287 + $0xf8] sm:$0xff]
          %v603 = vunpack.c.l.b16 %v539
          %v604 = vunpack.c.h.b16 %v539
          %v605 = vunpack.c.l.b16 %v540
          %v606 = vunpack.c.h.b16 %v540
          %v607 = vunpack.c.l.b16 %v541
          %v608 = vunpack.c.h.b16 %v541
          %v609 = vunpack.c.l.b16 %v542
          %v610 = vunpack.c.h.b16 %v542
          %v611 = vunpack.c.l.b16 %v543
          %v612 = vunpack.c.h.b16 %v543
          %v613 = vunpack.c.l.b16 %v544
          %v614 = vunpack.c.h.b16 %v544
          %v615 = vunpack.c.l.b16 %v545
          %v616 = vunpack.c.h.b16 %v545
          %v617 = vunpack.c.l.b16 %v546
          %v618 = vunpack.c.h.b16 %v546
          %v619 = vunpack.c.l.b16 %v547
          %v620 = vunpack.c.h.b16 %v547
          %v621 = vunpack.c.l.b16 %v548
          %v622 = vunpack.c.h.b16 %v548
          %v623 = vunpack.c.l.b16 %v549
          %v624 = vunpack.c.h.b16 %v549
          %v625 = vunpack.c.l.b16 %v550
          %v626 = vunpack.c.h.b16 %v550
          %v627 = vunpack.c.l.b16 %v551
          %v628 = vunpack.c.h.b16 %v551
          %v629 = vunpack.c.l.b16 %v552
          %v630 = vunpack.c.h.b16 %v552
          %v631 = vunpack.c.l.b16 %v553
          %v632 = vunpack.c.h.b16 %v553
          %v633 = vunpack.c.l.b16 %v554
          %v634 = vunpack.c.h.b16 %v554
          %v635 = vunpack.c.l.b16 %v555
          %v636 = vunpack.c.h.b16 %v555
          %v637 = vunpack.c.l.b16 %v556
          %v638 = vunpack.c.h.b16 %v556
          %v639 = vunpack.c.l.b16 %v557
          %v640 = vunpack.c.h.b16 %v557
          %v641 = vunpack.c.l.b16 %v558
          %v642 = vunpack.c.h.b16 %v558
          %v643 = vunpack.c.l.b16 %v559
          %v644 = vunpack.c.h.b16 %v559
          %v645 = vunpack.c.l.b16 %v560
          %v646 = vunpack.c.h.b16 %v560
          %v647 = vunpack.c.l.b16 %v561
          %v648 = vunpack.c.h.b16 %v561
          %v649 = vunpack.c.l.b16 %v562
          %v650 = vunpack.c.h.b16 %v562
          %v651 = vunpack.c.l.b16 %v563
          %v652 = vunpack.c.h.b16 %v563
          %v653 = vunpack.c.l.b16 %v564
          %v654 = vunpack.c.h.b16 %v564
          %v655 = vunpack.c.l.b16 %v565
          %v656 = vunpack.c.h.b16 %v565
          %v657 = vunpack.c.l.b16 %v566
          %v658 = vunpack.c.h.b16 %v566
          %v659 = vunpack.c.l.b16 %v567
          %v660 = vunpack.c.h.b16 %v567
          %v661 = vunpack.c.l.b16 %v568
          %v662 = vunpack.c.h.b16 %v568
          %v663 = vunpack.c.l.b16 %v569
          %v664 = vunpack.c.h.b16 %v569
          %v665 = vunpack.c.l.b16 %v570
          %v666 = vunpack.c.h.b16 %v570
          %v667 = vpack.c.b16 %v607, %v603
          %v668 = vpack.c.b16 %v608, %v604
          %v669 = vpack.c.b16 %v609, %v605
          %v670 = vpack.c.b16 %v610, %v606
          %v671 = vpack.c.b16 %v615, %v611
          %v672 = vpack.c.b16 %v616, %v612
          %v673 = vpack.c.b16 %v617, %v613
          %v674 = vpack.c.b16 %v618, %v614
          %v675 = vpack.c.b16 %v623, %v619
          %v676 = vpack.c.b16 %v624, %v620
          %v677 = vpack.c.b16 %v625, %v621
          %v678 = vpack.c.b16 %v626, %v622
          %v679 = vpack.c.b16 %v631, %v627
          %v680 = vpack.c.b16 %v632, %v628
          %v681 = vpack.c.b16 %v633, %v629
          %v682 = vpack.c.b16 %v634, %v630
          %v683 = vpack.c.b16 %v639, %v635
          %v684 = vpack.c.b16 %v640, %v636
          %v685 = vpack.c.b16 %v641, %v637
          %v686 = vpack.c.b16 %v642, %v638
          %v687 = vpack.c.b16 %v647, %v643
          %v688 = vpack.c.b16 %v648, %v644
          %v689 = vpack.c.b16 %v649, %v645
          %v690 = vpack.c.b16 %v650, %v646
          %v691 = vpack.c.b16 %v655, %v651
          %v692 = vpack.c.b16 %v656, %v652
          %v693 = vpack.c.b16 %v657, %v653
          %v694 = vpack.c.b16 %v658, %v654
          %v695 = vpack.c.b16 %v663, %v659
          %v696 = vpack.c.b16 %v664, %v660
          %v697 = vpack.c.b16 %v665, %v661
          %v698 = vpack.c.b16 %v666, %v662
          %731 = vmatpush.bf16.msra.mxu0 %v695
          %732 = vmatpush.bf16.msra.mxu0 %v691
          %733 = vmatpush.bf16.msra.mxu0 %v687
          %734 = vmatpush.bf16.msra.mxu0 %v683
          %735 = vmatpush.bf16.msra.mxu0 %v679
          %736 = vmatpush.bf16.msra.mxu0 %v675
          %737 = vmatpush.bf16.msra.mxu0 %v671
          %738 = vmatpush.bf16.msra.mxu0 %v667
          %739 = vmatmul.bf16.gmra.mxu0 %v538
          %v740 = vpop.f32.mrf.mxu0
          %v741 = vadd.f32 0.0, %v740
          %v742 = vpop.f32.mrf.mxu0
          %743 = vdwg.mxu0
          %744 = vmatpush.bf16.msra.mxu0 %v696
          %745 = vmatpush.bf16.msra.mxu0 %v692
          %746 = vmatpush.bf16.msra.mxu0 %v688
          %747 = vmatpush.bf16.msra.mxu0 %v684
          %748 = vmatpush.bf16.msra.mxu0 %v680
          %749 = vmatpush.bf16.msra.mxu0 %v676
          %750 = vmatpush.bf16.msra.mxu0 %v672
          %751 = vmatpush.bf16.msra.mxu0 %v668
          %752 = vmatmul.bf16.gmra.mxu0 %v538
          %v753 = vpop.f32.mrf.mxu0
          %v754 = vadd.f32 0.0, %v753
          %v755 = vpop.f32.mrf.mxu0
          %756 = vdwg.mxu0
          %757 = vmatpush.bf16.msra.mxu0 %v697
          %758 = vmatpush.bf16.msra.mxu0 %v693
          %759 = vmatpush.bf16.msra.mxu0 %v689
          %760 = vmatpush.bf16.msra.mxu0 %v685
          %761 = vmatpush.bf16.msra.mxu0 %v681
          %762 = vmatpush.bf16.msra.mxu0 %v677
          %763 = vmatpush.bf16.msra.mxu0 %v673
          %764 = vmatpush.bf16.msra.mxu0 %v669
          %765 = vmatmul.bf16.gmra.mxu0 %v538
          %v766 = vpop.f32.mrf.mxu0
          %v767 = vadd.f32 0.0, %v766
          %v768 = vpop.f32.mrf.mxu0
          %769 = vdwg.mxu0
          %770 = vmatpush.bf16.msra.mxu0 %v698
          %771 = vmatpush.bf16.msra.mxu0 %v694
          %772 = vmatpush.bf16.msra.mxu0 %v690
          %773 = vmatpush.bf16.msra.mxu0 %v686
          %774 = vmatpush.bf16.msra.mxu0 %v682
          %775 = vmatpush.bf16.msra.mxu0 %v678
          %776 = vmatpush.bf16.msra.mxu0 %v674
          %777 = vmatpush.bf16.msra.mxu0 %v670
          %778 = vmatmul.bf16.gmra.mxu0 %v538
          %v779 = vpop.f32.mrf.mxu0
          %v780 = vadd.f32 0.0, %v779
          %v781 = vpop.f32.mrf.mxu0
          %782 = vdwg.mxu0
          %v783 = vadd.f32 %v534, %v741
          %v784 = vadd.f32 %v535, %v754
          %v785 = vadd.f32 %v536, %v767
          %v786 = vadd.f32 %v537, %v780
          %v787 = vmul.f32 %v783, 0.2
          %v788 = vadd.f32 %v787, 0.5
          %v789 = vmax.f32 %v788, 0.0
          %v790 = vmin.f32 %v789, 1.0
          %v791 = vmul.f32 %v784, 0.2
          %v792 = vadd.f32 %v791, 0.5
          %v793 = vmax.f32 %v792, 0.0
          %v794 = vmin.f32 %v793, 1.0
          %v795 = vmul.f32 %v785, 0.2
          %v796 = vadd.f32 %v795, 0.5
          %v797 = vmax.f32 %v796, 0.0
          %v798 = vmin.f32 %v797, 1.0
          %v799 = vand.u32 2147483647, %v786
          %v800 = vadd.f32 %v799, 1.0
          %v801 = vrcp.pop %v800
          %v802 = vmul.f32 %v786, %v801
          %v803 = vmul.f32 %v794, %v523
          %v804 = vmul.f32 %v790, %v802
          %v805 = vadd.f32 %v803, %v804
          %v806 = vand.u32 2147483647, %v805
          %v807 = vadd.f32 %v806, 1.0
          %v808 = vrcp.pop %v807
          %v809 = vmul.f32 %v805, %v808
          %v810 = vmul.f32 %v798, %v809
          %s811 = scalar_select %p527, 1, 0
          %v812 = vstv %s811
          %vm813 = vcmp.eq.s32.totalorder %v812, 1
          %v814 = vsel %vm813, %v805, %v523
          %v815 = vsel %vm813, %v810, %v522
          %v816 = vpack.c.bf16 %v815, %v815
          %s817 = smul.addr %s529, 4
          %s818 = scalar_lea.vmem %s330, %s817 [#allocation10]
          %819 = vst [vmem:[%s818] sm:$0xf] %v816
        $region53: #{tpu_custom_call.1} parent=35 // loop_footer
          %s521 = sadd.s32 1, %s517
        $region54: #{tpu_custom_call.1} parent=35 // loop_footer_branch
          %516 = sbr.rel target = $region50
        $region55: #{tpu_custom_call.1} parent=35 // loop_exit
          _
        %820 = vst [vmem:[#allocation3] sm:$0xff] %v522
        %821 = vst [vmem:[#allocation4] sm:$0xff] %v523
        %s822 = sand.u32 %s166, 1
        %s823 = scalar_lea.sflag [#allocation7], %s822
        %s824 = sand.u32 %s166, 1
        %s825 = smul.addr %s824, 16
        %s826 = scalar_lea.vmem [#allocation10], %s825
        // Predicated region
        $region56: #{tpu_custom_call.1} parent=35 // pred_check
          %p827 = pneg %p176
        $region57: #{tpu_custom_call.1} parent=35 // pred_check_branch
          %829 = sbr.rel (%p827) target = $region59
        $region58: #{tpu_custom_call.1} parent=35 // pred_region
          %s830 = smul.u32 %s28, 2
          %s831 = ssub.s32 1, %s830
          %s832 = smul.u32 %s831, %s29
          %s833 = sadd.s32 %s830, %s832
          %s834 = smul.u32 4, %s833
          %836 = vsyncadd %s823, 0
          %s837 = smul.addr %s28, 12
          %s838 = sadd.s32 %s834, %s837
          %s839 = smul.addr %s838, 4
          %s840 = scalar_lea.hbm %s4, %s839
          %s841 = sshll.u32 %s826, 4
          %s842 = int_to_ptr.vmem [resolvable:$true] %s841
          %s843 = sshll.u32 %s840, 4
          %s844 = int_to_ptr.hbm [resolvable:$true] %s843
          %849 = dma.vmem_to_hbm [thread:$0]  %s842, 256, %s844, %s823, 64, 64, 4
        $region59: #{tpu_custom_call.1} parent=35 // pred_fallthru
          _
      $region36: #{tpu_custom_call.1} parent=5 // pred_fallthru
        _
      %p850 = scmp.le.s32.totalorder 2, %s19
      // Predicated region
      $region60: #{tpu_custom_call.1} parent=5 // pred_check
        %p851 = pneg %p850
      $region61: #{tpu_custom_call.1} parent=5 // pred_check_branch
        %853 = sbr.rel (%p851) target = $region63
      $region62: #{tpu_custom_call.1} parent=5 // pred_region
        %s854 = ssub.s32 %s19, 2
        // Predicated region
        $region64: #{tpu_custom_call.1} parent=62 // pred_check
          %p855 = pneg %p182
        $region65: #{tpu_custom_call.1} parent=62 // pred_check_branch
          %857 = sbr.rel (%p855) target = $region67
        $region66: #{tpu_custom_call.1} parent=62 // pred_region
          %s858 = sand.u32 %s167, 1
          %s859 = scalar_lea.sflag [#allocation7], %s858
          %s860 = sand.u32 %s167, 1
          %s861 = smul.addr %s860, 16
          %s862 = scalar_lea.vmem [#allocation10], %s861
          %864 = dma.done %s859, 256
        $region67: #{tpu_custom_call.1} parent=62 // pred_fallthru
          _
      $region63: #{tpu_custom_call.1} parent=5 // pred_fallthru
        _
    $region6: #{tpu_custom_call.1} parent=1 // loop_footer
      %s23 = sadd.s32 1, %s19
    $region7: #{tpu_custom_call.1} parent=1 // loop_footer_branch
      %18 = sbr.rel target = $region3
    $region8: #{tpu_custom_call.1} parent=1 // loop_exit
      _
    %865 = vsyncpa [#allocation6], 1
    %s866 = scalar_lea.sflag [#allocation6], 1
    %867 = vsyncpa %s866, 1
    %868 = vsyncpa [#allocation9], 1
    %s869 = scalar_lea.sflag [#allocation9], 1
    %870 = vsyncpa %s869, 1
    %871 = vsyncpa [#allocation7], 1
    %s872 = scalar_lea.sflag [#allocation7], 1
    %873 = vsyncpa %s872, 1

</llo_original>
